<compile_context>
chip_gen: v5e
topology: v5e:2x2
jax: 0.10.0
libtpu: 0.0.40
codegen_flags: <defaults>
</compile_context>

<pallas_src>
import functools
import math

import jax
import jax.numpy as jnp
from jax import lax
from jax.experimental import pallas as pl
from jax.experimental.pallas import tpu as pltpu

ALPHA = 0.2   # leaky-relu negative slope ("alpha" ctor arg)
V = 1.0       # Student's-t degrees of freedom ("v" ctor arg)


# --------------------------------------------------------------------------
# Kernel 0: feature projection   xw = x @ W1   (row-tiled, bf16 output)
# --------------------------------------------------------------------------
def feat_proj_kernel(x_ref, w_ref, out_ref):
    out_ref[...] = jnp.dot(x_ref[...], w_ref[...],
                           preferred_element_type=jnp.float32
                           ).astype(out_ref.dtype)


# --------------------------------------------------------------------------
# Kernel 1: layer-1 aggregation + leaky_relu + layer-2 projection
#   hw = leaky_relu(adj @ xw) @ W2
# grid = (N // tm, N // tk); axis 1 is the adj contraction (reduction).
# --------------------------------------------------------------------------
def gcn1_agg_proj_kernel(xw_ref, adj_ref, w2_ref, hw_ref, acc_ref, *,
                         leaky_slope):
    k = pl.program_id(1)

    @pl.when(k == 0)
    def _():
        acc_ref[...] = jnp.zeros_like(acc_ref)

    acc_ref[...] += jnp.dot(adj_ref[...], xw_ref[...],
                            preferred_element_type=jnp.float32)

    @pl.when(k == pl.num_programs(1) - 1)
    def _():
        h = acc_ref[...]                                        # (tm, H) f32
        h = jnp.where(h > 0, h, leaky_slope * h)
        hw = jnp.dot(h, w2_ref[...], preferred_element_type=jnp.float32)
        hw_ref[...] = hw.astype(hw_ref.dtype)                   # (tm, E) bf16


# --------------------------------------------------------------------------
# Kernel 2: layer-2 aggregation fused with get_Q
#   z = adj @ hw ; q = StudentT(z, mu) row-normalized
# --------------------------------------------------------------------------
def gcn2_agg_q_kernel(hw_ref, adj_ref, mu_ref, z_ref, q_ref, acc_ref):
    k = pl.program_id(1)

    @pl.when(k == 0)
    def _():
        acc_ref[...] = jnp.zeros_like(acc_ref)

    acc_ref[...] += jnp.dot(adj_ref[...], hw_ref[...],
                            preferred_element_type=jnp.float32)

    @pl.when(k == pl.num_programs(1) - 1)
    def _():
        z = acc_ref[...]                                        # (tm, E) f32
        z_ref[...] = z

        mu = mu_ref[...].astype(jnp.float32)                    # (K, E)
        # squared distances via the matmul identity (MXU, no (tm,K,E) temp):
        zmu = lax.dot_general(z, mu, (((1,), (1,)), ((), ())),
                              preferred_element_type=jnp.float32)   # (tm, K)
        z2 = jnp.sum(z * z, axis=1, keepdims=True)                  # (tm, 1)
        ones_e = jnp.ones((1, mu.shape[1]), jnp.float32)
        mu2 = lax.dot_general(ones_e, mu * mu, (((1,), (1,)), ((), ())),
                              preferred_element_type=jnp.float32)   # (1, K)
        d2 = jnp.maximum(z2 - 2.0 * zmu + mu2, 0.0)

        q = pl.reciprocal(1.0 + d2 * (1.0 / V), approx=True)
        if V != 1.0:  # pow((v+1)/2) is the identity for v == 1 (default)
            q = jnp.exp(0.5 * (V + 1.0) * jnp.log(q))
        q = q * pl.reciprocal(jnp.sum(q, axis=1, keepdims=True), approx=True)
        q_ref[...] = q


# --------------------------------------------------------------------------
# Kernel 3: decoder  A_pred = sigmoid(z z^T), 2-D parallel grid, fused
# sigmoid, lane-dense (tm, tn) output block, no explicit transpose of z.
# --------------------------------------------------------------------------
def decoder_kernel(zi_ref, zj_ref, a_ref):
    s = lax.dot_general(zi_ref[...], zj_ref[...],
                        (((1,), (1,)), ((), ())),
                        preferred_element_type=jnp.float32)
    a_ref[...] = jax.nn.sigmoid(s)


# --------------------------------------------------------------------------
# Wrapper
# --------------------------------------------------------------------------
def daegc_forward(x, adj, w1, w2, cluster_layer, *, tile=128):
    N, F = x.shape
    H = w1.shape[1]
    E = w2.shape[1]
    K = cluster_layer.shape[0]

    tm = min(tile, N)
    tk = min(tile, N)
    tn = min(tile, N)
    assert N % tm == 0 and N % tk == 0 and N % tn == 0, "N must divide the tile"

    # adj is the only O(N^2) input: stream it as bf16 (f32 accumulation).
    adj_bf16 = adj.astype(jnp.bfloat16)

    # ---- feature projection: xw = x @ W1 (computed once, bf16) ----
    xw = pl.pallas_call(
        feat_proj_kernel,
        out_shape=jax.ShapeDtypeStruct((N, H), jnp.bfloat16),
        grid_spec=pltpu.PrefetchScalarGridSpec(
            num_scalar_prefetch=0,
            grid=(N // tm,),
            in_specs=[
                pl.BlockSpec((tm, F), lambda i: (i, 0)),       # x rows
                pl.BlockSpec((F, H), lambda i: (0, 0)),        # W1 resident
            ],
            out_specs=pl.BlockSpec((tm, H), lambda i: (i, 0))),
        compiler_params=pltpu.CompilerParams(
            dimension_semantics=("parallel",)),
    )(x, w1)

    # ---- layer 1 aggregate + leaky_relu + W2 projection: hw = lrelu(adj@xw)@W2
    hw = pl.pallas_call(
        functools.partial(gcn1_agg_proj_kernel, leaky_slope=ALPHA),
        out_shape=jax.ShapeDtypeStruct((N, E), jnp.bfloat16),
        grid_spec=pltpu.PrefetchScalarGridSpec(
            num_scalar_prefetch=0,
            grid=(N // tm, N // tk),
            in_specs=[
                pl.BlockSpec((tk, H), lambda i, k: (k, 0)),    # xw rows
                pl.BlockSpec((tm, tk), lambda i, k: (i, k)),   # adj block
                pl.BlockSpec((H, E), lambda i, k: (0, 0)),     # W2 resident
            ],
            out_specs=pl.BlockSpec((tm, E), lambda i, k: (i, 0)),
            scratch_shapes=[pltpu.VMEM((tm, H), jnp.float32)]),
        compiler_params=pltpu.CompilerParams(
            dimension_semantics=("parallel", "arbitrary")),
    )(xw, adj_bf16, w2)

    # ---- layer 2 aggregate + get_Q fused: z = adj @ hw, q = StudentT(z, mu) ----
    z, q = pl.pallas_call(
        gcn2_agg_q_kernel,
        out_shape=(jax.ShapeDtypeStruct((N, E), jnp.float32),
                   jax.ShapeDtypeStruct((N, K), jnp.float32)),
        grid_spec=pltpu.PrefetchScalarGridSpec(
            num_scalar_prefetch=0,
            grid=(N // tm, N // tk),
            in_specs=[
                pl.BlockSpec((tk, E), lambda i, k: (k, 0)),    # hw rows
                pl.BlockSpec((tm, tk), lambda i, k: (i, k)),   # adj block
                pl.BlockSpec((K, E), lambda i, k: (0, 0)),     # mu resident
            ],
            out_specs=(pl.BlockSpec((tm, E), lambda i, k: (i, 0)),
                       pl.BlockSpec((tm, K), lambda i, k: (i, 0))),
            scratch_shapes=[pltpu.VMEM((tm, E), jnp.float32)]),
        compiler_params=pltpu.CompilerParams(
            dimension_semantics=("parallel", "arbitrary")),
    )(hw, adj_bf16, cluster_layer)

    # ---- decoder: A_pred = sigmoid(z z^T) on a 2-D parallel grid ----
    a_pred = pl.pallas_call(
        decoder_kernel,
        out_shape=jax.ShapeDtypeStruct((N, N), jnp.float32),
        grid_spec=pltpu.PrefetchScalarGridSpec(
            num_scalar_prefetch=0,
            grid=(N // tm, N // tn),
            in_specs=[
                pl.BlockSpec((tm, E), lambda i, j: (i, 0)),    # z row tile
                pl.BlockSpec((tn, E), lambda i, j: (j, 0)),    # z col tile
            ],
            out_specs=pl.BlockSpec((tm, tn), lambda i, j: (i, j))),
        compiler_params=pltpu.CompilerParams(
            dimension_semantics=("parallel", "parallel")),
    )(z, z)

    return a_pred, z, q


def _xavier_normal(key, shape):
    fan_in, fan_out = shape[-2], shape[-1]
    std = math.sqrt(2.0 / (fan_in + fan_out))
    return std * jax.random.normal(key, shape, dtype=jnp.float32)


if __name__ == "__main__":
    # Small, module-consistent shapes (N chosen so the 128-tile grid is real).
    N = 256           # number of graph nodes
    num_features = 32
    hidden_size = 64
    embedding_size = 32
    num_clusters = 4

    key = jax.random.PRNGKey(0)
    kx, kadj, kw1, kw2, kmu = jax.random.split(key, 5)

    # Node features.
    x = jax.random.normal(kx, (N, num_features), dtype=jnp.float32)

    # Symmetric binary adjacency with self-loops, row-normalized.
    a = (jax.random.uniform(kadj, (N, N)) < 0.05).astype(jnp.float32)
    a = jnp.maximum(a, a.T)
    a = a + jnp.eye(N, dtype=jnp.float32)
    adj = a / jnp.sum(a, axis=1, keepdims=True)

    # Deterministic synthetic parameters (shapes per __init__).
    w1 = _xavier_normal(kw1, (num_features, hidden_size))
    w2 = _xavier_normal(kw2, (hidden_size, embedding_size))
    cluster_layer = _xavier_normal(kmu, (num_clusters, embedding_size))

    A_pred, z, q = daegc_forward(x, adj, w1, w2, cluster_layer)
    jax.block_until_ready((A_pred, z, q))

    assert A_pred.shape == (N, N)
    assert z.shape == (N, embedding_size)
    assert q.shape == (N, num_clusters)
    assert bool(jnp.all(jnp.isfinite(A_pred)))
    assert bool(jnp.all(jnp.isfinite(z)))
    assert bool(jnp.all(jnp.isfinite(q)))
    # q rows are (approximately) normalized probabilities.
    assert bool(jnp.all(jnp.abs(jnp.sum(q, axis=1) - 1.0) < 1e-2))
    print("KERNEL_OK")
</pallas_src>

<mosaic_0001>
module attributes {stable_mosaic.version = 11 : i64} {
  func.func @feat_proj_kernel(%arg0: i32, %arg1: memref<128x32xf32, #tpu.memory_space<vmem>>, %arg2: memref<32x64xf32, #tpu.memory_space<vmem>>, %arg3: memref<128x64xbf16, #tpu.memory_space<vmem>>) attributes {dimension_semantics = [#tpu.dimension_semantics<parallel>], iteration_bounds = array<i64: 2>, scalar_prefetch = 0 : i64, scratch_operands = 0 : i64, tpu.core_type = #tpu.core_type<tc>, window_params = [{transform_indices = @transform_0, window_bounds = array<i64: 128, 32>}, {pipeline_mode = #tpu.pipeline_mode<synchronous>, transform_indices = @transform_1, window_bounds = array<i64: 32, 64>}, {transform_indices = @transform_2, window_bounds = array<i64: 128, 64>}]} {
    %c0 = arith.constant 0 : index
    %c0_0 = arith.constant 0 : index
    %0 = vector.load %arg1[%c0, %c0_0] : memref<128x32xf32, #tpu.memory_space<vmem>>, vector<128x32xf32>
    %c0_1 = arith.constant 0 : index
    %c0_2 = arith.constant 0 : index
    %1 = vector.load %arg2[%c0_1, %c0_2] : memref<32x64xf32, #tpu.memory_space<vmem>>, vector<32x64xf32>
    %cst = arith.constant dense<0.000000e+00> : vector<128x64xf32>
    %2 = tpu.matmul %0, %1, %cst {dimension_numbers = #tpu.dot_dimension_numbers<[1], [0], [0], [1], [0, 0, 1, 1], [], []>} : vector<128x32xf32>, vector<32x64xf32>, vector<128x64xf32> -> vector<128x64xf32>
    %3 = arith.truncf %2 : vector<128x64xf32> to vector<128x64xbf16>
    %c0_3 = arith.constant 0 : index
    %c0_4 = arith.constant 0 : index
    %4 = vector.load %arg3[%c0_3, %c0_4] : memref<128x64xbf16, #tpu.memory_space<vmem>>, vector<128x64xbf16>
    tpu.vector_store %arg3[%c0_3, %c0_4], %3 {strides = array<i32>} : memref<128x64xbf16, #tpu.memory_space<vmem>>, vector<128x64xbf16>,
    return
  }
  func.func @transform_0(%arg0: i32) -> (i32, i32) {
    %c0_i32 = arith.constant 0 : i32
    %c0_i32_0 = arith.constant 0 : i32
    return %arg0, %c0_i32 : i32, i32
  }
  func.func @transform_1(%arg0: i32) -> (i32, i32) {
    %c0_i32 = arith.constant 0 : i32
    %c0_i32_0 = arith.constant 0 : i32
    %c0_i32_1 = arith.constant 0 : i32
    return %c0_i32, %c0_i32_0 : i32, i32
  }
  func.func @transform_2(%arg0: i32) -> (i32, i32) {
    %c0_i32 = arith.constant 0 : i32
    %c0_i32_0 = arith.constant 0 : i32
    return %arg0, %c0_i32 : i32, i32
  }
}

</mosaic_0001>

<llo_original>
// kernel: tpu_custom_call.1
$region0: #{tpu_custom_call.1}
  #allocation0 [shape = 'u32[]', space=smem, size = 0x4, offset = 0x4, fixed_abs, tag = 'smem constant byte address 0x4 - core index']
  #allocation1 [shape = 'u32[72,128]{1,0:T(1,128)}', space=vmem, size = 0x9000, scoped, tag = 'internal scratch']
  %s0 = inlined_call_operand.vmem [shape: f32[256,32], index: 0, kind: input, shape index: {}]
  %s1 = inlined_call_operand.vmem [shape: f32[32,64], index: 1, kind: input, shape index: {}]
  %s2 = inlined_call_operand.vmem [shape: bf16[256,64], index: 2, kind: output, shape index: {}]
  %s3 = sld [smem:[#allocation0]]
  $region41: #{tpu_custom_call.1} parent=0
    _
  %s5 = ssub.s32 1, %s3
  %s6 = scalar_select 0, %s5, %s3
  loop: start=0, step=1, limit=4
  $region2: #{tpu_custom_call.1} parent=0 // loop_pre_header
    _
  $region3: #{tpu_custom_call.1} parent=0 // loop_header
    %s8 = sphi 0, %s12
    %p9 = scmp.ge.s32.totalorder %s8, 4
    %s18 = sphi 0, %s20
    %s21 = sphi 0, %s18
    %s22 = sphi 0, %s21
    %s38 = sphi 0, %s22
    %s42 = sphi 0, %s42
    %s44 = sphi 0, %s42
    %s45 = sphi 0, %s44
    %s59 = sphi 0, %s45
    %s65 = sphi 0, %s67
    %s68 = sphi 0, %s65
    %s69 = sphi 0, %s68
    %s85 = sphi 0, %s69
  $region4: #{tpu_custom_call.1} parent=0 // loop_header_branch
    %11 = sbr.rel (%p9) target = $region8
  $region5: #{tpu_custom_call.1} parent=0 // loop_body
    %s13 = ssub.s32 %s8, 1
    %s14 = ssub.s32 %s8, 2
    %s15 = sadd.s32 %s8, 1
    %s16 = ssub.s32 %s8, %s15
    %p17 = scmp.eq.s32.totalorder %s16, 0
    %s19 = sadd.s32 %s18, 1
    %s20 = scalar_select %p17, %s18, %s19
    %p23 = pneg %p17
    %p24 = scmp.eq.s32.totalorder %s8, 1
    %p25 = por %p23, %p24
    %p26 = scmp.ne.s32.totalorder %s18, %s21
    %p27 = scmp.eq.s32.totalorder %s8, 0
    %p28 = por %p26, %p27
    %p29 = scmp.ne.s32.totalorder %s18, %s21
    %p30 = scmp.eq.s32.totalorder %s13, 1
    %p31 = por %p29, %p30
    %p32 = scmp.ne.s32.totalorder %s21, %s22
    %p33 = scmp.eq.s32.totalorder %s13, 0
    %p34 = por %p32, %p33
    %p35 = scmp.ne.s32.totalorder %s21, %s22
    %p36 = scmp.eq.s32.totalorder %s14, 1
    %p37 = por %p35, %p36
    %p39 = scmp.ne.s32.totalorder %s22, %s38
    %p40 = scmp.eq.s32.totalorder %s14, 0
    %p41 = por %p39, %p40
    %s43 = sadd.s32 %s42, 1
    %p46 = scmp.eq.s32.totalorder %s8, 1
    %p47 = scmp.ne.s32.totalorder %s42, %s44
    %p48 = scmp.eq.s32.totalorder %s8, 0
    %p49 = por %p47, %p48
    %p50 = scmp.ne.s32.totalorder %s42, %s44
    %p51 = scmp.eq.s32.totalorder %s13, 1
    %p52 = por %p50, %p51
    %p53 = scmp.ne.s32.totalorder %s44, %s45
    %p54 = scmp.eq.s32.totalorder %s13, 0
    %p55 = por %p53, %p54
    %p56 = scmp.ne.s32.totalorder %s44, %s45
    %p57 = scmp.eq.s32.totalorder %s14, 1
    %p58 = por %p56, %p57
    %p60 = scmp.ne.s32.totalorder %s45, %s59
    %p61 = scmp.eq.s32.totalorder %s14, 0
    %p62 = por %p60, %p61
    %s63 = ssub.s32 %s8, %s15
    %p64 = scmp.eq.s32.totalorder %s63, 0
    %s66 = sadd.s32 %s65, 1
    %s67 = scalar_select %p64, %s65, %s66
    %p70 = pneg %p64
    %p71 = scmp.eq.s32.totalorder %s8, 1
    %p72 = por %p70, %p71
    %p73 = scmp.ne.s32.totalorder %s65, %s68
    %p74 = scmp.eq.s32.totalorder %s8, 0
    %p75 = por %p73, %p74
    %p76 = scmp.ne.s32.totalorder %s65, %s68
    %p77 = scmp.eq.s32.totalorder %s13, 1
    %p78 = por %p76, %p77
    %p79 = scmp.ne.s32.totalorder %s68, %s69
    %p80 = scmp.eq.s32.totalorder %s13, 0
    %p81 = por %p79, %p80
    %p82 = scmp.ne.s32.totalorder %s68, %s69
    %p83 = scmp.eq.s32.totalorder %s14, 1
    %p84 = por %p82, %p83
    %p86 = scmp.ne.s32.totalorder %s69, %s85
    %p87 = scmp.eq.s32.totalorder %s14, 0
    %p88 = por %p86, %p87
    %p89 = scmp.le.s32.totalorder 1, %s8
    %p90 = scmp.lt.s32.totalorder %s8, 3
    %p91 = pnand %p89, %p90
    %p92 = pneg %p91
    // Predicated region
    $region9: #{tpu_custom_call.1} parent=5 // pred_check
      _
    $region10: #{tpu_custom_call.1} parent=5 // pred_check_branch
      %94 = sbr.rel (%p91) target = $region12
    $region11: #{tpu_custom_call.1} parent=5 // pred_region
      %s95 = ssub.s32 %s8, 1
      // Predicated region
      $region13: #{tpu_custom_call.1} parent=11 // pred_check
        %p96 = pneg %p55
      $region14: #{tpu_custom_call.1} parent=11 // pred_check_branch
        %98 = sbr.rel (%p96) target = $region16
      $region15: #{tpu_custom_call.1} parent=11 // pred_region
        _
      $region16: #{tpu_custom_call.1} parent=11 // pred_fallthru
        _
    $region12: #{tpu_custom_call.1} parent=5 // pred_fallthru
      _
    %p99 = scmp.lt.s32.totalorder %s8, 2
    // Predicated region
    $region17: #{tpu_custom_call.1} parent=5 // pred_check
      %p100 = pneg %p99
    $region18: #{tpu_custom_call.1} parent=5 // pred_check_branch
      %102 = sbr.rel (%p100) target = $region20
    $region19: #{tpu_custom_call.1} parent=5 // pred_region
      // Predicated region
      $region21: #{tpu_custom_call.1} parent=19 // pred_check
        %p103 = pneg %p28
      $region22: #{tpu_custom_call.1} parent=19 // pred_check_branch
        %105 = sbr.rel (%p103) target = $region24
      $region23: #{tpu_custom_call.1} parent=19 // pred_region
        %s106 = smul.u32 16, %s8
        %p107 = scmp.lt.s32.totalorder %s106, 31
        %s108 = scalar_select %p107, %s106, 31
        %s109 = smul.addr %s108, 8
        %s110 = scalar_lea.vmem %s0, %s109
        %s111 = smul.u32 16, %s8
      $region24: #{tpu_custom_call.1} parent=19 // pred_fallthru
        _
    $region20: #{tpu_custom_call.1} parent=5 // pred_fallthru
      _
    %p112 = scmp.le.s32.totalorder 1, %s8
    %p113 = scmp.lt.s32.totalorder %s8, 3
    %p114 = pnand %p112, %p113
    %p115 = pneg %p114
    // Predicated region
    $region25: #{tpu_custom_call.1} parent=5 // pred_check
      _
    $region26: #{tpu_custom_call.1} parent=5 // pred_check_branch
      %117 = sbr.rel (%p114) target = $region28
    $region27: #{tpu_custom_call.1} parent=5 // pred_region
      %s118 = ssub.s32 %s8, 1
      %s119 = smul.u32 16, %s13
      %p120 = scmp.lt.s32.totalorder %s119, 31
      %s121 = scalar_select %p120, %s119, 31
      %s122 = smul.addr %s121, 8
      %s123 = scalar_lea.vmem %s0, %s122
      %p124 = pneg %p34
      %p125 = pneg %p31
      %p126 = pneg %p55
      %p127 = pneg %p52
      %p128 = pneg %p81
      %p129 = pneg %p78
      %s130 = smul.u32 16, %s13
      %p131 = scmp.lt.s32.totalorder %s130, 31
      %s132 = scalar_select %p131, %s130, 31
      %s133 = smul.addr %s132, 4
      %s134 = scalar_lea.vmem %s2, %s133
      %s135 = smul.u32 16, %s13
      %p136 = scmp.lt.s32.totalorder %s135, 31
      %s137 = scalar_select %p136, %s135, 31
      %s138 = smul.addr %s137, 8
      %s139 = scalar_lea.vmem %s0, %s138
      %s140 = smul.u32 16, %s13
      %s141 = smul.u32 16, %s13
      %p142 = scmp.lt.s32.totalorder %s141, 31
      %s143 = scalar_select %p142, %s141, 31
      %s144 = smul.addr %s143, 4
      %s145 = scalar_lea.vmem %s2, %s144
      %s146 = smul.u32 16, %s13
      %v147 = vld [vmem:[%s139] sm:$0xff]
      %v148 = vld [vmem:[%s139 + $0x8] sm:$0xff]
      %v149 = vld [vmem:[%s139 + $0x10] sm:$0xff]
      %v150 = vld [vmem:[%s139 + $0x18] sm:$0xff]
      %v151 = vld [vmem:[%s139 + $0x20] sm:$0xff]
      %v152 = vld [vmem:[%s139 + $0x28] sm:$0xff]
      %v153 = vld [vmem:[%s139 + $0x30] sm:$0xff]
      %v154 = vld [vmem:[%s139 + $0x38] sm:$0xff]
      %v155 = vld [vmem:[%s139 + $0x40] sm:$0xff]
      %v156 = vld [vmem:[%s139 + $0x48] sm:$0xff]
      %v157 = vld [vmem:[%s139 + $0x50] sm:$0xff]
      %v158 = vld [vmem:[%s139 + $0x58] sm:$0xff]
      %v159 = vld [vmem:[%s139 + $0x60] sm:$0xff]
      %v160 = vld [vmem:[%s139 + $0x68] sm:$0xff]
      %v161 = vld [vmem:[%s139 + $0x70] sm:$0xff]
      %v162 = vld [vmem:[%s139 + $0x78] sm:$0xff]
      %v163 = vld [vmem:[%s1] sm:$0xff]
      %v164 = vld [vmem:[%s1 + $0x8] sm:$0xff]
      %v165 = vld [vmem:[%s1 + $0x10] sm:$0xff]
      %v166 = vld [vmem:[%s1 + $0x18] sm:$0xff]
      %vm167 = vcmask 261120
      %v169 = vsel %vm167, %v147, 0
      %v172 = vsel %vm167, %v148, 0
      %v175 = vsel %vm167, %v149, 0
      %v178 = vsel %vm167, %v150, 0
      %v181 = vsel %vm167, %v151, 0
      %v184 = vsel %vm167, %v152, 0
      %v187 = vsel %vm167, %v153, 0
      %v190 = vsel %vm167, %v154, 0
      %v193 = vsel %vm167, %v155, 0
      %v196 = vsel %vm167, %v156, 0
      %v199 = vsel %vm167, %v157, 0
      %v202 = vsel %vm167, %v158, 0
      %v205 = vsel %vm167, %v159, 0
      %v208 = vsel %vm167, %v160, 0
      %v211 = vsel %vm167, %v161, 0
      %v214 = vsel %vm167, %v162, 0
      %216 = vmatpush.msra.mxu0 0.0
      %217 = vmatpush.msra.mxu0 0.0
      %218 = vmatpush.msra.mxu0 0.0
      %219 = vmatpush.msra.mxu0 0.0
      %220 = vmatpush.msra.mxu0 0.0
      %221 = vmatpush.msra.mxu0 0.0
      %222 = vmatpush.msra.mxu0 0.0
      %223 = vmatpush.msra.mxu0 0.0
      %224 = vmatpush.msra.mxu0 0.0
      %225 = vmatpush.msra.mxu0 0.0
      %226 = vmatpush.msra.mxu0 0.0
      %227 = vmatpush.msra.mxu0 0.0
      %228 = vmatpush.msra.mxu0 %v166
      %229 = vmatpush.msra.mxu0 %v165
      %230 = vmatpush.msra.mxu0 %v164
      %231 = vmatpush.msra.mxu0 %v163
      %232 = vmatmul.f32.gmra.mxu0 %v169
      %v233 = vpop.f32.mrf.mxu0
      %v234 = vadd.f32 0.0, %v233
      %235 = vmatmul.f32.gmra.mxu0 %v172
      %v236 = vpop.f32.mrf.mxu0
      %v237 = vadd.f32 0.0, %v236
      %238 = vmatmul.f32.gmra.mxu0 %v175
      %v239 = vpop.f32.mrf.mxu0
      %v240 = vadd.f32 0.0, %v239
      %241 = vmatmul.f32.gmra.mxu0 %v178
      %v242 = vpop.f32.mrf.mxu0
      %v243 = vadd.f32 0.0, %v242
      %244 = vmatmul.f32.gmra.mxu0 %v181
      %v245 = vpop.f32.mrf.mxu0
      %v246 = vadd.f32 0.0, %v245
      %247 = vmatmul.f32.gmra.mxu0 %v184
      %v248 = vpop.f32.mrf.mxu0
      %v249 = vadd.f32 0.0, %v248
      %250 = vmatmul.f32.gmra.mxu0 %v187
      %v251 = vpop.f32.mrf.mxu0
      %v252 = vadd.f32 0.0, %v251
      %253 = vmatmul.f32.gmra.mxu0 %v190
      %v254 = vpop.f32.mrf.mxu0
      %v255 = vadd.f32 0.0, %v254
      %256 = vmatmul.f32.gmra.mxu0 %v193
      %v257 = vpop.f32.mrf.mxu0
      %v258 = vadd.f32 0.0, %v257
      %259 = vmatmul.f32.gmra.mxu0 %v196
      %v260 = vpop.f32.mrf.mxu0
      %v261 = vadd.f32 0.0, %v260
      %262 = vmatmul.f32.gmra.mxu0 %v199
      %v263 = vpop.f32.mrf.mxu0
      %v264 = vadd.f32 0.0, %v263
      %265 = vmatmul.f32.gmra.mxu0 %v202
      %v266 = vpop.f32.mrf.mxu0
      %v267 = vadd.f32 0.0, %v266
      %268 = vmatmul.f32.gmra.mxu0 %v205
      %v269 = vpop.f32.mrf.mxu0
      %v270 = vadd.f32 0.0, %v269
      %271 = vmatmul.f32.gmra.mxu0 %v208
      %v272 = vpop.f32.mrf.mxu0
      %v273 = vadd.f32 0.0, %v272
      %274 = vmatmul.f32.gmra.mxu0 %v211
      %v275 = vpop.f32.mrf.mxu0
      %v276 = vadd.f32 0.0, %v275
      %277 = vmatmul.f32.gmra.mxu0 %v214
      %v278 = vpop.f32.mrf.mxu0
      %v279 = vadd.f32 0.0, %v278
      %280 = vdwg.mxu0
      %v281 = vpack.c.bf16 %v234, %v234
      %v282 = vpack.c.bf16 %v237, %v237
      %v283 = vpack.c.bf16 %v240, %v240
      %v284 = vpack.c.bf16 %v243, %v243
      %v285 = vpack.c.bf16 %v246, %v246
      %v286 = vpack.c.bf16 %v249, %v249
      %v287 = vpack.c.bf16 %v252, %v252
      %v288 = vpack.c.bf16 %v255, %v255
      %v289 = vpack.c.bf16 %v258, %v258
      %v290 = vpack.c.bf16 %v261, %v261
      %v291 = vpack.c.bf16 %v264, %v264
      %v292 = vpack.c.bf16 %v267, %v267
      %v293 = vpack.c.bf16 %v270, %v270
      %v294 = vpack.c.bf16 %v273, %v273
      %v295 = vpack.c.bf16 %v276, %v276
      %v296 = vpack.c.bf16 %v279, %v279
      %vm297 = vcmask 519168
      %298 = vst.msk [vmem:[%s145] sm:$0xf] %vm297, %v281
      %299 = vst.msk [vmem:[%s145 + $0x4] sm:$0xf] %vm297, %v282
      %300 = vst.msk [vmem:[%s145 + $0x8] sm:$0xf] %vm297, %v283
      %301 = vst.msk [vmem:[%s145 + $0xc] sm:$0xf] %vm297, %v284
      %302 = vst.msk [vmem:[%s145 + $0x10] sm:$0xf] %vm297, %v285
      %303 = vst.msk [vmem:[%s145 + $0x14] sm:$0xf] %vm297, %v286
      %304 = vst.msk [vmem:[%s145 + $0x18] sm:$0xf] %vm297, %v287
      %305 = vst.msk [vmem:[%s145 + $0x1c] sm:$0xf] %vm297, %v288
      %306 = vst.msk [vmem:[%s145 + $0x20] sm:$0xf] %vm297, %v289
      %307 = vst.msk [vmem:[%s145 + $0x24] sm:$0xf] %vm297, %v290
      %308 = vst.msk [vmem:[%s145 + $0x28] sm:$0xf] %vm297, %v291
      %309 = vst.msk [vmem:[%s145 + $0x2c] sm:$0xf] %vm297, %v292
      %310 = vst.msk [vmem:[%s145 + $0x30] sm:$0xf] %vm297, %v293
      %311 = vst.msk [vmem:[%s145 + $0x34] sm:$0xf] %vm297, %v294
      %312 = vst.msk [vmem:[%s145 + $0x38] sm:$0xf] %vm297, %v295
      %313 = vst.msk [vmem:[%s145 + $0x3c] sm:$0xf] %vm297, %v296
      %s314 = smul.u32 16, %s13
      %p315 = scmp.lt.s32.totalorder %s314, 31
      %s316 = scalar_select %p315, %s314, 31
      %s317 = smul.addr %s316, 4
      %s318 = scalar_lea.vmem %s2, %s317
      // Predicated region
      $region29: #{tpu_custom_call.1} parent=27 // pred_check
        %p319 = pneg %p78
      $region30: #{tpu_custom_call.1} parent=27 // pred_check_branch
        %321 = sbr.rel (%p319) target = $region32
      $region31: #{tpu_custom_call.1} parent=27 // pred_region
        %s322 = smul.u32 16, %s13
      $region32: #{tpu_custom_call.1} parent=27 // pred_fallthru
        _
    $region28: #{tpu_custom_call.1} parent=5 // pred_fallthru
      _
    %p323 = scmp.le.s32.totalorder 2, %s8
    // Predicated region
    $region33: #{tpu_custom_call.1} parent=5 // pred_check
      %p324 = pneg %p323
    $region34: #{tpu_custom_call.1} parent=5 // pred_check_branch
      %326 = sbr.rel (%p324) target = $region36
    $region35: #{tpu_custom_call.1} parent=5 // pred_region
      %s327 = ssub.s32 %s8, 2
      // Predicated region
      $region37: #{tpu_custom_call.1} parent=35 // pred_check
        %p328 = pneg %p84
      $region38: #{tpu_custom_call.1} parent=35 // pred_check_branch
        %330 = sbr.rel (%p328) target = $region40
      $region39: #{tpu_custom_call.1} parent=35 // pred_region
        %s331 = smul.u32 16, %s14
        %p332 = scmp.lt.s32.totalorder %s331, 31
        %s333 = scalar_select %p332, %s331, 31
        %s334 = smul.addr %s333, 4
        %s335 = scalar_lea.vmem %s2, %s334
      $region40: #{tpu_custom_call.1} parent=35 // pred_fallthru
        _
    $region36: #{tpu_custom_call.1} parent=5 // pred_fallthru
      _
  $region6: #{tpu_custom_call.1} parent=0 // loop_footer
    %s12 = sadd.s32 1, %s8
  $region7: #{tpu_custom_call.1} parent=0 // loop_footer_branch
    %7 = sbr.rel target = $region3
  $region8: #{tpu_custom_call.1} parent=0 // loop_exit
    _

</llo_original>
